<compile_context>
chip_gen: v6e
topology: v6e:2x2x1
jax: 0.10.0
libtpu: 0.0.40
codegen_flags: <defaults>
</compile_context>

<pallas_src>
import math
import numpy as np
import jax
import jax.numpy as jnp
from jax.experimental import pallas as pl
from jax.experimental.pallas import tpu as pltpu

# --- model hyper-parameters (small, consistent with the module) -------------
D_MODEL = 32
NHEAD = 4
HEAD_DIM = D_MODEL // NHEAD
DIM_FF = 64
LN_EPS = 1e-5
NEG_BIG = -1e30


def cross_attention_without_norm3(tgt, memory, params, query_pos=None, pos=None):
    f32 = jnp.float32
    B, Lq, D = tgt.shape
    _, Lk, _ = memory.shape
    assert D == D_MODEL
    H = NHEAD
    HD = D // H
    DFF = params["linear1_weight"].shape[0]
    scale = 1.0 / math.sqrt(HD)

    if query_pos is None:
        query_pos = jnp.zeros_like(tgt)
    if pos is None:
        pos = jnp.zeros_like(memory)

    NQ = B * Lq            # stacked query rows (16)
    NK = B * Lk            # stacked key/value rows (32)
    XR = NQ + 2 * NK       # rows through the fused qkv projection (80)
    BHQ = B * H * Lq       # stacked (batch, head, query) rows (64)

    # ---- sequence slab: two (XR, D) halves; the kernel builds the fused QKV
    #      input with a single VPU add:  X = slab[:XR] + slab[XR:]
    #      X rows = [tgt+query_pos (NQ) | memory+pos (NK) | memory (NK)]
    tgt_f = tgt.astype(f32).reshape(NQ, D)
    qp_f = query_pos.astype(f32).reshape(NQ, D)
    mem_f = memory.astype(f32).reshape(NK, D)
    pos_f = pos.astype(f32).reshape(NK, D)
    a_half = jnp.concatenate([tgt_f, mem_f, mem_f], axis=0)               # (XR, D)
    p_half = jnp.concatenate([qp_f, pos_f, jnp.zeros((NK, D), f32)], axis=0)
    seq = jnp.concatenate([a_half, p_half], axis=0)                       # (2*XR, D)

    # ---- lane-packed constant slab ------------------------------------------
    w_in = params["in_proj_weight"].astype(f32)                           # (3D, D)
    b_in = params["in_proj_bias"].astype(f32)                             # (3D,)
    wq_t = w_in[:D].T * scale           # fold 1/sqrt(head_dim) into q projection
    wk_t = w_in[D:2 * D].T
    wv_t = w_in[2 * D:].T
    bqkv = jnp.concatenate([b_in[:D] * scale, b_in[D:2 * D], b_in[2 * D:]])
    wo_t = params["out_proj_weight"].astype(f32).T                        # (D, D)
    bo = params["out_proj_bias"].astype(f32)
    w1_t = params["linear1_weight"].astype(f32).T                         # (D, DFF)
    b1 = params["linear1_bias"].astype(f32)
    w2_t = params["linear2_weight"].astype(f32).T                         # (DFF, D)
    b2 = params["linear2_bias"].astype(f32)

    # head mask: row (b, h, i) keeps head h's feature columns (precomputed host-side)
    hh = (np.arange(BHQ)[:, None] // Lq) % H
    head_mask = (hh == (np.arange(D)[None, :] // HD)).astype(np.float32)  # (BHQ, D)
    # additive score mask: -1e30 where query-row batch != key-column batch
    rb = np.arange(BHQ)[:, None] // (H * Lq)
    cb = np.arange(NK)[None, :] // Lk
    score_mask = np.where(rb == cb, 0.0, NEG_BIG).astype(np.float32)      # (BHQ, NK)

    W_LANES = max(3 * D, D + DFF, 2 * D + NK)                             # 96

    def lane_pad(x):
        x = jnp.asarray(x, f32)
        return jnp.pad(x, ((0, 0), (0, W_LANES - x.shape[1])))

    def row_pad(x, rows):
        x = jnp.asarray(x, f32)
        return jnp.pad(x, ((0, rows - x.shape[0]), (0, 0)))

    def blk8(row):
        return jnp.pad(row, ((0, 8 - row.shape[0]), (0, 0)))

    misc_rows = max(DFF, BHQ)                                             # 64
    qkv_blk = lane_pad(jnp.concatenate([wq_t, wk_t, wv_t], axis=1))       # (D, 96)
    ow1_blk = lane_pad(jnp.concatenate([wo_t, w1_t], axis=1))             # (D, 96)
    w2m_blk = lane_pad(jnp.concatenate(
        [row_pad(w2_t, misc_rows),
         row_pad(head_mask, misc_rows),
         row_pad(score_mask, misc_rows)], axis=1))                        # (64, 96)
    bias1 = lane_pad(bqkv.reshape(1, 3 * D))                              # [bq|bk|bv]
    bias2 = lane_pad(jnp.concatenate([bo, b1]).reshape(1, D + DFF))       # [bo|b1]
    bias3 = lane_pad(b2.reshape(1, D))                                    # [b2|0]

    OFF_QKV = 0
    OFF_OW1 = OFF_QKV + D
    OFF_W2M = OFF_OW1 + D
    OFF_BQKV = OFF_W2M + misc_rows
    OFF_BOB1 = OFF_BQKV + 8
    OFF_B2 = OFF_BOB1 + 8
    wslab = jnp.concatenate(
        [qkv_blk, ow1_blk, w2m_blk, blk8(bias1), blk8(bias2), blk8(bias3)], axis=0)

    def kernel(seq_ref, w_ref, out_ref):
        # fused q/k/v input rows: [tgt+query_pos ; memory+pos ; memory]
        x = seq_ref[0:XR, :] + seq_ref[XR:2 * XR, :]                      # (80, 32)

        # ONE MXU push for all three projections (lane-packed weights)
        y = jnp.dot(x, w_ref[OFF_QKV:OFF_QKV + D, :],
                    preferred_element_type=jnp.float32)                   # (80, 96)
        y = y + w_ref[OFF_BQKV:OFF_BQKV + 1, :]                           # + [bq|bk|bv]

        q_all = y[0:NQ, 0:D]                       # (NQ, D), scale folded in
        k_all = y[NQ:NQ + NK, D:2 * D]             # (NK, D)
        v_all = y[NQ + NK:XR, 2 * D:3 * D]         # (NK, D)

        # stacked (batch, head, query) rows, head-block-diagonal masked
        q_big = jnp.concatenate(
            [q_all[b * Lq:(b + 1) * Lq, :] for b in range(B) for _ in range(H)],
            axis=0)                                                       # (BHQ, D)
        q_bd = q_big * w_ref[OFF_W2M:OFF_W2M + BHQ, D:2 * D]

        # ONE score matmul for every (batch, head); cross-batch keys masked off
        s = jnp.einsum('qd,kd->qk', q_bd, k_all,
                       preferred_element_type=jnp.float32)                # (BHQ, NK)
        s = s + w_ref[OFF_W2M:OFF_W2M + BHQ, 2 * D:2 * D + NK]
        s = s - jnp.max(s, axis=-1, keepdims=True)
        e = jnp.exp(s)
        p = e / jnp.sum(e, axis=-1, keepdims=True)          # exact softmax divide

        # ONE attention-output matmul; head mask + per-batch head-block sum
        o_full = jnp.dot(p, v_all, preferred_element_type=jnp.float32)
        o_full = o_full * w_ref[OFF_W2M:OFF_W2M + BHQ, D:2 * D]
        o_parts = []
        for b in range(B):
            ob = o_full[b * H * Lq:(b * H + 1) * Lq, :]
            for h in range(1, H):
                ob = ob + o_full[(b * H + h) * Lq:(b * H + h + 1) * Lq, :]
            o_parts.append(ob)
        o_all = jnp.concatenate(o_parts, axis=0)                          # (NQ, D)

        # output projection (batched across B) + residual + LayerNorm (no affine)
        tgt2 = jnp.dot(o_all, w_ref[OFF_OW1:OFF_OW1 + D, 0:D],
                       preferred_element_type=jnp.float32)
        tgt2 = tgt2 + w_ref[OFF_BOB1:OFF_BOB1 + 1, 0:D]
        xr = seq_ref[0:NQ, :] + tgt2                      # dropout2 = identity
        mu = jnp.mean(xr, axis=-1, keepdims=True)
        xc = xr - mu
        var = jnp.mean(xc * xc, axis=-1, keepdims=True)
        xn = xc * jax.lax.rsqrt(var + LN_EPS)

        # feed-forward (batched across B): linear2(relu(linear1(xn)))
        h1 = jnp.dot(xn, w_ref[OFF_OW1:OFF_OW1 + D, D:D + DFF],
                     preferred_element_type=jnp.float32)
        h1 = jnp.maximum(h1 + w_ref[OFF_BOB1:OFF_BOB1 + 1, D:D + DFF], 0.0)
        ff = jnp.dot(h1, w_ref[OFF_W2M:OFF_W2M + DFF, 0:D],
                     preferred_element_type=jnp.float32)
        ff = ff + w_ref[OFF_B2:OFF_B2 + 1, 0:D]

        # Output kept (NQ, D); at this size a lane-dense relayout would cost
        # more XLU work than the few masked stores it removes (review: measure first).
        out_ref[...] = (xn + ff).astype(out_ref.dtype)

    out = pl.pallas_call(
        kernel,
        out_shape=jax.ShapeDtypeStruct((NQ, D), tgt.dtype),
        in_specs=[pl.BlockSpec(memory_space=pltpu.MemorySpace.VMEM),
                  pl.BlockSpec(memory_space=pltpu.MemorySpace.VMEM)],
        out_specs=pl.BlockSpec(memory_space=pltpu.MemorySpace.VMEM),
    )(seq, wslab)
    return out.reshape(B, Lq, D)


# --- pure-JAX reference (mirrors PyTorch eval-mode forward) -------------------
def reference_forward(tgt, memory, params, query_pos, pos):
    D = tgt.shape[-1]
    wq, wk, wv = jnp.split(params["in_proj_weight"], 3, axis=0)
    bq, bk, bv = jnp.split(params["in_proj_bias"], 3)
    q = jnp.einsum("bld,ed->ble", tgt + query_pos, wq) + bq
    k = jnp.einsum("bld,ed->ble", memory + pos, wk) + bk
    v = jnp.einsum("bld,ed->ble", memory, wv) + bv
    B, Lq, _ = q.shape
    Lk = k.shape[1]
    qh = q.reshape(B, Lq, NHEAD, HEAD_DIM).transpose(0, 2, 1, 3)
    kh = k.reshape(B, Lk, NHEAD, HEAD_DIM).transpose(0, 2, 1, 3)
    vh = v.reshape(B, Lk, NHEAD, HEAD_DIM).transpose(0, 2, 1, 3)
    s = jnp.einsum("bhqd,bhkd->bhqk", qh, kh) / math.sqrt(HEAD_DIM)
    a = jax.nn.softmax(s, axis=-1)
    o = jnp.einsum("bhqk,bhkd->bhqd", a, vh).transpose(0, 2, 1, 3).reshape(B, Lq, D)
    tgt2 = jnp.einsum("bld,ed->ble", o, params["out_proj_weight"]) + params["out_proj_bias"]
    x = tgt + tgt2
    mu = x.mean(-1, keepdims=True)
    var = ((x - mu) ** 2).mean(-1, keepdims=True)
    x = (x - mu) / jnp.sqrt(var + LN_EPS)
    h1 = jax.nn.relu(jnp.einsum("bld,fd->blf", x, params["linear1_weight"])
                     + params["linear1_bias"])
    ff = jnp.einsum("blf,df->bld", h1, params["linear2_weight"]) + params["linear2_bias"]
    return x + ff


def init_params(key):
    ks = jax.random.split(key, 8)
    s = 0.05
    return {
        "in_proj_weight": s * jax.random.normal(ks[0], (3 * D_MODEL, D_MODEL), jnp.float32),
        "in_proj_bias":   s * jax.random.normal(ks[1], (3 * D_MODEL,), jnp.float32),
        "out_proj_weight": s * jax.random.normal(ks[2], (D_MODEL, D_MODEL), jnp.float32),
        "out_proj_bias":   s * jax.random.normal(ks[3], (D_MODEL,), jnp.float32),
        "linear1_weight":  s * jax.random.normal(ks[4], (DIM_FF, D_MODEL), jnp.float32),
        "linear1_bias":    s * jax.random.normal(ks[5], (DIM_FF,), jnp.float32),
        "linear2_weight":  s * jax.random.normal(ks[6], (D_MODEL, DIM_FF), jnp.float32),
        "linear2_bias":    s * jax.random.normal(ks[7], (D_MODEL,), jnp.float32),
    }


if __name__ == "__main__":
    key = jax.random.PRNGKey(0)
    k_p, k_t, k_m, k_qp, k_kp = jax.random.split(key, 5)

    B, LQ, LK = 2, 8, 16
    params = init_params(k_p)
    tgt = jax.random.normal(k_t, (B, LQ, D_MODEL), jnp.float32)
    memory = jax.random.normal(k_m, (B, LK, D_MODEL), jnp.float32)
    query_pos = jax.random.normal(k_qp, (B, LQ, D_MODEL), jnp.float32)
    pos = jax.random.normal(k_kp, (B, LK, D_MODEL), jnp.float32)

    out = cross_attention_without_norm3(tgt, memory, params, query_pos, pos)
    out = jax.block_until_ready(out)

    ref = jax.block_until_ready(reference_forward(tgt, memory, params, query_pos, pos))
    # Exact softmax divide -> tight tolerance vs the reference.
    np.testing.assert_allclose(np.asarray(out), np.asarray(ref), rtol=1e-4, atol=1e-4)

    print("KERNEL_OK")
</pallas_src>

<mosaic_0001>
module attributes {stable_mosaic.version = 11 : i64} {
  func.func @kernel(%arg0: memref<160x32xf32, #tpu.memory_space<vmem>>, %arg1: memref<152x96xf32, #tpu.memory_space<vmem>>, %arg2: memref<16x32xf32, #tpu.memory_space<vmem>>) attributes {dimension_semantics = [], scalar_prefetch = 0 : i64, scratch_operands = 0 : i64, tpu.core_type = #tpu.core_type<tc>} {
    %c0 = arith.constant 0 : index
    %c0_0 = arith.constant 0 : index
    %0 = vector.load %arg0[%c0, %c0_0] : memref<160x32xf32, #tpu.memory_space<vmem>>, vector<80x32xf32>
    %c80 = arith.constant 80 : index
    %c0_1 = arith.constant 0 : index
    %1 = vector.load %arg0[%c80, %c0_1] : memref<160x32xf32, #tpu.memory_space<vmem>>, vector<80x32xf32>
    %2 = arith.addf %0, %1 : vector<80x32xf32>
    %c0_2 = arith.constant 0 : index
    %c0_3 = arith.constant 0 : index
    %3 = vector.load %arg1[%c0_2, %c0_3] : memref<152x96xf32, #tpu.memory_space<vmem>>, vector<32x96xf32>
    %cst = arith.constant dense<0.000000e+00> : vector<80x96xf32>
    %4 = tpu.matmul %2, %3, %cst {dimension_numbers = #tpu.dot_dimension_numbers<[1], [0], [0], [1], [0, 0, 1, 1], [], []>} : vector<80x32xf32>, vector<32x96xf32>, vector<80x96xf32> -> vector<80x96xf32>
    %c128 = arith.constant 128 : index
    %c0_4 = arith.constant 0 : index
    %5 = vector.load %arg1[%c128, %c0_4] : memref<152x96xf32, #tpu.memory_space<vmem>>, vector<1x96xf32>
    %6 = vector.broadcast %5 : vector<1x96xf32> to vector<80x96xf32>
    %7 = arith.addf %4, %6 : vector<80x96xf32>
    %8 = vector.extract_strided_slice %7 {offsets = [0, 0], sizes = [16, 32], strides = [1, 1]} : vector<80x96xf32> to vector<16x32xf32>
    %9 = vector.extract_strided_slice %7 {offsets = [16, 32], sizes = [32, 32], strides = [1, 1]} : vector<80x96xf32> to vector<32x32xf32>
    %10 = vector.extract_strided_slice %7 {offsets = [48, 64], sizes = [32, 32], strides = [1, 1]} : vector<80x96xf32> to vector<32x32xf32>
    %11 = vector.extract_strided_slice %8 {offsets = [0, 0], sizes = [8, 32], strides = [1, 1]} : vector<16x32xf32> to vector<8x32xf32>
    %12 = vector.extract_strided_slice %8 {offsets = [0, 0], sizes = [8, 32], strides = [1, 1]} : vector<16x32xf32> to vector<8x32xf32>
    %13 = vector.extract_strided_slice %8 {offsets = [0, 0], sizes = [8, 32], strides = [1, 1]} : vector<16x32xf32> to vector<8x32xf32>
    %14 = vector.extract_strided_slice %8 {offsets = [0, 0], sizes = [8, 32], strides = [1, 1]} : vector<16x32xf32> to vector<8x32xf32>
    %15 = vector.extract_strided_slice %8 {offsets = [8, 0], sizes = [8, 32], strides = [1, 1]} : vector<16x32xf32> to vector<8x32xf32>
    %16 = vector.extract_strided_slice %8 {offsets = [8, 0], sizes = [8, 32], strides = [1, 1]} : vector<16x32xf32> to vector<8x32xf32>
    %17 = vector.extract_strided_slice %8 {offsets = [8, 0], sizes = [8, 32], strides = [1, 1]} : vector<16x32xf32> to vector<8x32xf32>
    %18 = vector.extract_strided_slice %8 {offsets = [8, 0], sizes = [8, 32], strides = [1, 1]} : vector<16x32xf32> to vector<8x32xf32>
    %19 = tpu.concatenate %11, %12, %13, %14, %15, %16, %17, %18 in 0 : vector<8x32xf32>, vector<8x32xf32>, vector<8x32xf32>, vector<8x32xf32>, vector<8x32xf32>, vector<8x32xf32>, vector<8x32xf32>, vector<8x32xf32> -> vector<64x32xf32>
    %c64 = arith.constant 64 : index
    %c32 = arith.constant 32 : index
    %20 = vector.load %arg1[%c64, %c32] : memref<152x96xf32, #tpu.memory_space<vmem>>, vector<64x32xf32>
    %21 = arith.mulf %19, %20 : vector<64x32xf32>
    "tpu.trace_start"() <{level = 10 : i32, message = "qd,kd->qk"}> : () -> ()
    %cst_5 = arith.constant dense<0.000000e+00> : vector<64x32xf32>
    %22 = tpu.matmul %21, %9, %cst_5 {dimension_numbers = #tpu.dot_dimension_numbers<[1], [1], [0], [0], [0, 0, 1, 0], [], []>} : vector<64x32xf32>, vector<32x32xf32>, vector<64x32xf32> -> vector<64x32xf32>
    "tpu.trace_stop"() : () -> ()
    %c64_6 = arith.constant 64 : index
    %c64_7 = arith.constant 64 : index
    %23 = vector.load %arg1[%c64_6, %c64_7] : memref<152x96xf32, #tpu.memory_space<vmem>>, vector<64x32xf32>
    %24 = arith.addf %22, %23 : vector<64x32xf32>
    %cst_8 = arith.constant dense<0xFF800000> : vector<64xf32>
    %25 = vector.multi_reduction <maximumf>, %24, %cst_8 [1] : vector<64x32xf32> to vector<64xf32>
    %26 = vector.shape_cast %25 : vector<64xf32> to vector<64x1xf32>
    %27 = vector.broadcast %26 : vector<64x1xf32> to vector<64x32xf32>
    %28 = arith.subf %24, %27 : vector<64x32xf32>
    %29 = math.exp %28 : vector<64x32xf32>
    %cst_9 = arith.constant dense<0.000000e+00> : vector<64xf32>
    %30 = vector.multi_reduction <add>, %29, %cst_9 [1] : vector<64x32xf32> to vector<64xf32>
    %31 = vector.shape_cast %30 : vector<64xf32> to vector<64x1xf32>
    %32 = vector.broadcast %31 : vector<64x1xf32> to vector<64x32xf32>
    %33 = arith.divf %29, %32 : vector<64x32xf32>
    %cst_10 = arith.constant dense<0.000000e+00> : vector<64x32xf32>
    %34 = tpu.matmul %33, %10, %cst_10 {dimension_numbers = #tpu.dot_dimension_numbers<[1], [0], [0], [1], [0, 0, 1, 1], [], []>} : vector<64x32xf32>, vector<32x32xf32>, vector<64x32xf32> -> vector<64x32xf32>
    %c64_11 = arith.constant 64 : index
    %c32_12 = arith.constant 32 : index
    %35 = vector.load %arg1[%c64_11, %c32_12] : memref<152x96xf32, #tpu.memory_space<vmem>>, vector<64x32xf32>
    %36 = arith.mulf %34, %35 : vector<64x32xf32>
    %37 = vector.extract_strided_slice %36 {offsets = [0, 0], sizes = [8, 32], strides = [1, 1]} : vector<64x32xf32> to vector<8x32xf32>
    %38 = vector.extract_strided_slice %36 {offsets = [8, 0], sizes = [8, 32], strides = [1, 1]} : vector<64x32xf32> to vector<8x32xf32>
    %39 = arith.addf %37, %38 : vector<8x32xf32>
    %40 = vector.extract_strided_slice %36 {offsets = [16, 0], sizes = [8, 32], strides = [1, 1]} : vector<64x32xf32> to vector<8x32xf32>
    %41 = arith.addf %39, %40 : vector<8x32xf32>
    %42 = vector.extract_strided_slice %36 {offsets = [24, 0], sizes = [8, 32], strides = [1, 1]} : vector<64x32xf32> to vector<8x32xf32>
    %43 = arith.addf %41, %42 : vector<8x32xf32>
    %44 = vector.extract_strided_slice %36 {offsets = [32, 0], sizes = [8, 32], strides = [1, 1]} : vector<64x32xf32> to vector<8x32xf32>
    %45 = vector.extract_strided_slice %36 {offsets = [40, 0], sizes = [8, 32], strides = [1, 1]} : vector<64x32xf32> to vector<8x32xf32>
    %46 = arith.addf %44, %45 : vector<8x32xf32>
    %47 = vector.extract_strided_slice %36 {offsets = [48, 0], sizes = [8, 32], strides = [1, 1]} : vector<64x32xf32> to vector<8x32xf32>
    %48 = arith.addf %46, %47 : vector<8x32xf32>
    %49 = vector.extract_strided_slice %36 {offsets = [56, 0], sizes = [8, 32], strides = [1, 1]} : vector<64x32xf32> to vector<8x32xf32>
    %50 = arith.addf %48, %49 : vector<8x32xf32>
    %51 = tpu.concatenate %43, %50 in 0 : vector<8x32xf32>, vector<8x32xf32> -> vector<16x32xf32>
    %c32_13 = arith.constant 32 : index
    %c0_14 = arith.constant 0 : index
    %52 = vector.load %arg1[%c32_13, %c0_14] : memref<152x96xf32, #tpu.memory_space<vmem>>, vector<32x32xf32>
    %cst_15 = arith.constant dense<0.000000e+00> : vector<16x32xf32>
    %53 = tpu.matmul %51, %52, %cst_15 {dimension_numbers = #tpu.dot_dimension_numbers<[1], [0], [0], [1], [0, 0, 1, 1], [], []>} : vector<16x32xf32>, vector<32x32xf32>, vector<16x32xf32> -> vector<16x32xf32>
    %c136 = arith.constant 136 : index
    %c0_16 = arith.constant 0 : index
    %54 = vector.load %arg1[%c136, %c0_16] : memref<152x96xf32, #tpu.memory_space<vmem>>, vector<1x32xf32>
    %55 = vector.broadcast %54 : vector<1x32xf32> to vector<16x32xf32>
    %56 = arith.addf %53, %55 : vector<16x32xf32>
    %c0_17 = arith.constant 0 : index
    %c0_18 = arith.constant 0 : index
    %57 = vector.load %arg0[%c0_17, %c0_18] : memref<160x32xf32, #tpu.memory_space<vmem>>, vector<16x32xf32>
    %58 = arith.addf %57, %56 : vector<16x32xf32>
    %cst_19 = arith.constant dense<0.000000e+00> : vector<16xf32>
    %59 = vector.multi_reduction <add>, %58, %cst_19 [1] : vector<16x32xf32> to vector<16xf32>
    %60 = vector.shape_cast %59 : vector<16xf32> to vector<16x1xf32>
    %cst_20 = arith.constant 3.200000e+01 : f32
    %61 = vector.broadcast %cst_20 : f32 to vector<16x1xf32>
    %62 = arith.divf %60, %61 : vector<16x1xf32>
    %63 = vector.broadcast %62 : vector<16x1xf32> to vector<16x32xf32>
    %64 = arith.subf %58, %63 : vector<16x32xf32>
    %65 = arith.mulf %64, %64 : vector<16x32xf32>
    %cst_21 = arith.constant dense<0.000000e+00> : vector<16xf32>
    %66 = vector.multi_reduction <add>, %65, %cst_21 [1] : vector<16x32xf32> to vector<16xf32>
    %67 = vector.shape_cast %66 : vector<16xf32> to vector<16x1xf32>
    %cst_22 = arith.constant 3.200000e+01 : f32
    %68 = vector.broadcast %cst_22 : f32 to vector<16x1xf32>
    %69 = arith.divf %67, %68 : vector<16x1xf32>
    %cst_23 = arith.constant 9.99999974E-6 : f32
    %70 = vector.broadcast %cst_23 : f32 to vector<16x1xf32>
    %71 = arith.addf %69, %70 : vector<16x1xf32>
    %72 = math.rsqrt %71 : vector<16x1xf32>
    %73 = vector.broadcast %72 : vector<16x1xf32> to vector<16x32xf32>
    %74 = arith.mulf %64, %73 : vector<16x32xf32>
    %c32_24 = arith.constant 32 : index
    %c32_25 = arith.constant 32 : index
    %75 = vector.load %arg1[%c32_24, %c32_25] : memref<152x96xf32, #tpu.memory_space<vmem>>, vector<32x64xf32>
    %cst_26 = arith.constant dense<0.000000e+00> : vector<16x64xf32>
    %76 = tpu.matmul %74, %75, %cst_26 {dimension_numbers = #tpu.dot_dimension_numbers<[1], [0], [0], [1], [0, 0, 1, 1], [], []>} : vector<16x32xf32>, vector<32x64xf32>, vector<16x64xf32> -> vector<16x64xf32>
    %c136_27 = arith.constant 136 : index
    %c32_28 = arith.constant 32 : index
    %77 = vector.load %arg1[%c136_27, %c32_28] : memref<152x96xf32, #tpu.memory_space<vmem>>, vector<1x64xf32>
    %78 = vector.broadcast %77 : vector<1x64xf32> to vector<16x64xf32>
    %79 = arith.addf %76, %78 : vector<16x64xf32>
    %cst_29 = arith.constant 0.000000e+00 : f32
    %80 = vector.broadcast %cst_29 : f32 to vector<16x64xf32>
    %81 = arith.maximumf %79, %80 : vector<16x64xf32>
    %c64_30 = arith.constant 64 : index
    %c0_31 = arith.constant 0 : index
    %82 = vector.load %arg1[%c64_30, %c0_31] : memref<152x96xf32, #tpu.memory_space<vmem>>, vector<64x32xf32>
    %cst_32 = arith.constant dense<0.000000e+00> : vector<16x32xf32>
    %83 = tpu.matmul %81, %82, %cst_32 {dimension_numbers = #tpu.dot_dimension_numbers<[1], [0], [0], [1], [0, 0, 1, 1], [], []>} : vector<16x64xf32>, vector<64x32xf32>, vector<16x32xf32> -> vector<16x32xf32>
    %c144 = arith.constant 144 : index
    %c0_33 = arith.constant 0 : index
    %84 = vector.load %arg1[%c144, %c0_33] : memref<152x96xf32, #tpu.memory_space<vmem>>, vector<1x32xf32>
    %85 = vector.broadcast %84 : vector<1x32xf32> to vector<16x32xf32>
    %86 = arith.addf %83, %85 : vector<16x32xf32>
    %87 = arith.addf %74, %86 : vector<16x32xf32>
    %c0_34 = arith.constant 0 : index
    %c0_35 = arith.constant 0 : index
    %88 = vector.load %arg2[%c0_34, %c0_35] : memref<16x32xf32, #tpu.memory_space<vmem>>, vector<16x32xf32>
    tpu.vector_store %arg2[%c0_34, %c0_35], %87 {strides = array<i32>} : memref<16x32xf32, #tpu.memory_space<vmem>>, vector<16x32xf32>,
    return
  }
}

</mosaic_0001>

<llo_original>
// kernel: tpu_custom_call.1
$region0: #{tpu_custom_call.1}
  #allocation0 [shape = 'u32[]', space=smem, size = 0x4, offset = 0x4, fixed_abs, tag = 'smem constant byte address 0x4 - core index']
  #allocation1 [shape = 'u32[144,128]{1,0:T(1,128)}', space=vmem, size = 0x12000, scoped, tag = 'internal scratch']
  %s0 = inlined_call_operand.vmem [shape: f32[160,32], index: 0, kind: input, shape index: {}]
  %s1 = inlined_call_operand.vmem [shape: f32[152,96], index: 1, kind: input, shape index: {}]
  %s2 = inlined_call_operand.hbm [shape: f32[16,32], index: 2, kind: output, shape index: {}]
  %s3 = sld [smem:[#allocation0]]
  $region18: #{tpu_custom_call.1} parent=0
    _
  %s5 = ssub.s32 1, %s3
  %s6 = scalar_select 0, %s5, %s3
  $region1: #{tpu_custom_call.1} parent=0
    #allocation2 [shape = 'u8[8192]{0}', space=vmem, size = 0x2000, scoped, tag = 'output window, operand 0, single buffered']
    #allocation3 [shape = 's32[1]{0}', space=sflag, size = 0x4, scoped, tag = 'scoped memory for tpu_custom_call.1']
    %7 = vsyncpa [#allocation3], 0
    // Predicated region
    $region2: #{tpu_custom_call.1} parent=1 // pred_check
      _
    $region3: #{tpu_custom_call.1} parent=1 // pred_check_branch
      %9 = sbr.rel (0) target = $region5
    $region4: #{tpu_custom_call.1} parent=1 // pred_region
      _
    $region5: #{tpu_custom_call.1} parent=1 // pred_fallthru
      _
    // Predicated region
    $region6: #{tpu_custom_call.1} parent=1 // pred_check
      _
    $region7: #{tpu_custom_call.1} parent=1 // pred_check_branch
      %11 = sbr.rel (0) target = $region9
    $region8: #{tpu_custom_call.1} parent=1 // pred_region
      _
    $region9: #{tpu_custom_call.1} parent=1 // pred_fallthru
      _
    %v12 = vld [vmem:[%s0] sm:$0xff]
    %v13 = vld [vmem:[%s0 + $0x8] sm:$0xff]
    %v14 = vld [vmem:[%s0 + $0x10] sm:$0xff]
    %v15 = vld [vmem:[%s0 + $0x18] sm:$0xff]
    %v16 = vld [vmem:[%s0 + $0x20] sm:$0xff]
    %v17 = vld [vmem:[%s0 + $0x28] sm:$0xff]
    %v18 = vld [vmem:[%s0 + $0x30] sm:$0xff]
    %v19 = vld [vmem:[%s0 + $0x38] sm:$0xff]
    %v20 = vld [vmem:[%s0 + $0x40] sm:$0xff]
    %v21 = vld [vmem:[%s0 + $0x48] sm:$0xff]
    %v22 = vld [vmem:[%s0 + $0x50] sm:$0xff]
    %v23 = vld [vmem:[%s0 + $0x58] sm:$0xff]
    %v24 = vld [vmem:[%s0 + $0x60] sm:$0xff]
    %v25 = vld [vmem:[%s0 + $0x68] sm:$0xff]
    %v26 = vld [vmem:[%s0 + $0x70] sm:$0xff]
    %v27 = vld [vmem:[%s0 + $0x78] sm:$0xff]
    %v28 = vld [vmem:[%s0 + $0x80] sm:$0xff]
    %v29 = vld [vmem:[%s0 + $0x88] sm:$0xff]
    %v30 = vld [vmem:[%s0 + $0x90] sm:$0xff]
    %v31 = vld [vmem:[%s0 + $0x98] sm:$0xff]
    %v32 = vadd.f32 %v12, %v22
    %v33 = vadd.f32 %v13, %v23
    %v34 = vadd.f32 %v14, %v24
    %v35 = vadd.f32 %v15, %v25
    %v36 = vadd.f32 %v16, %v26
    %v37 = vadd.f32 %v17, %v27
    %v38 = vadd.f32 %v18, %v28
    %v39 = vadd.f32 %v19, %v29
    %v40 = vadd.f32 %v20, %v30
    %v41 = vadd.f32 %v21, %v31
    %v42 = vld [vmem:[%s1] sm:$0xff]
    %v43 = vld [vmem:[%s1 + $0x8] sm:$0xff]
    %v44 = vld [vmem:[%s1 + $0x10] sm:$0xff]
    %v45 = vld [vmem:[%s1 + $0x18] sm:$0xff]
    %v46 = vld [vmem:[%s1 + $0x80] sm:$0x1]
    %v47 = vlaneseq
    %v48 = vshrl.u32 %v47, 7
    %v49 = vsub.s32 0, %v48
    %v50 = vrot.slane %v46, %v49
    %vm51 = vcmask 261120
    %v53 = vsel %vm51, %v32, 0
    %v56 = vsel %vm51, %v33, 0
    %v59 = vsel %vm51, %v34, 0
    %v62 = vsel %vm51, %v35, 0
    %v65 = vsel %vm51, %v36, 0
    %v68 = vsel %vm51, %v37, 0
    %v71 = vsel %vm51, %v38, 0
    %v74 = vsel %vm51, %v39, 0
    %v77 = vsel %vm51, %v40, 0
    %v80 = vsel %vm51, %v41, 0
    %82 = vmatprep.subr.mxu0 0.0
    %83 = vmatpush1.msra.mxu0 0.0
    %84 = vmatprep.subr.mxu0 0.0
    %85 = vmatpush1.msra.mxu0 0.0
    %86 = vmatprep.subr.mxu0 0.0
    %87 = vmatpush1.msra.mxu0 0.0
    %88 = vmatprep.subr.mxu0 0.0
    %89 = vmatpush1.msra.mxu0 0.0
    %90 = vmatprep.subr.mxu0 0.0
    %91 = vmatpush1.msra.mxu0 0.0
    %92 = vmatprep.subr.mxu0 0.0
    %93 = vmatpush1.msra.mxu0 0.0
    %94 = vmatprep.subr.mxu0 0.0
    %95 = vmatpush1.msra.mxu0 0.0
    %96 = vmatprep.subr.mxu0 0.0
    %97 = vmatpush1.msra.mxu0 0.0
    %98 = vmatprep.subr.mxu0 0.0
    %99 = vmatpush1.msra.mxu0 0.0
    %100 = vmatprep.subr.mxu0 0.0
    %101 = vmatpush1.msra.mxu0 0.0
    %102 = vmatprep.subr.mxu0 0.0
    %103 = vmatpush1.msra.mxu0 0.0
    %104 = vmatprep.subr.mxu0 0.0
    %105 = vmatpush1.msra.mxu0 0.0
    %106 = vmatprep.subr.mxu0 0.0
    %107 = vmatpush1.msra.mxu0 %v45
    %108 = vmatprep.subr.mxu0 0.0
    %109 = vmatpush1.msra.mxu0 %v44
    %110 = vmatprep.subr.mxu0 0.0
    %111 = vmatpush1.msra.mxu0 %v43
    %112 = vmatprep.subr.mxu0 0.0
    %113 = vmatpush1.msra.mxu0 %v42
    %114 = vmatprep.subr.mxu0 0.0
    %115 = vmatpush2.msra.mxu0 0.0
    %116 = vmatprep.subr.mxu0 0.0
    %117 = vmatpush2.msra.mxu0 0.0
    %118 = vmatprep.subr.mxu0 0.0
    %119 = vmatpush2.msra.mxu0 0.0
    %120 = vmatprep.subr.mxu0 0.0
    %121 = vmatpush2.msra.mxu0 0.0
    %122 = vmatprep.subr.mxu0 0.0
    %123 = vmatpush2.msra.mxu0 0.0
    %124 = vmatprep.subr.mxu0 0.0
    %125 = vmatpush2.msra.mxu0 0.0
    %126 = vmatprep.subr.mxu0 0.0
    %127 = vmatpush2.msra.mxu0 0.0
    %128 = vmatprep.subr.mxu0 0.0
    %129 = vmatpush2.msra.mxu0 0.0
    %130 = vmatprep.subr.mxu0 0.0
    %131 = vmatpush2.msra.mxu0 0.0
    %132 = vmatprep.subr.mxu0 0.0
    %133 = vmatpush2.msra.mxu0 0.0
    %134 = vmatprep.subr.mxu0 0.0
    %135 = vmatpush2.msra.mxu0 0.0
    %136 = vmatprep.subr.mxu0 0.0
    %137 = vmatpush2.msra.mxu0 0.0
    %138 = vmatprep.subr.mxu0 0.0
    %139 = vmatpush2.msra.mxu0 0.0
    %140 = vmatprep.subr.mxu0 0.0
    %141 = vmatpush2.msra.mxu0 0.0
    %142 = vmatprep.subr.mxu0 0.0
    %143 = vmatpush2.msra.mxu0 0.0
    %144 = vmatprep.subr.mxu0 0.0
    %145 = vmatpush2.msra.mxu0 0.0
    %146 = vmatprep.mubr.f32.mxu0 0.0
    %147 = vmatmul.mubr.f32.gmra.mxu0 %v53
    %v148 = vpop.f32.mrf.mxu0
    %v149 = vadd.f32 %v50, %v148
    %v150 = vpop.f32.mrf.mxu0
    %151 = vmatprep.mubr.f32.mxu0 0.0
    %152 = vmatmul.mubr.f32.gmra.mxu0 %v56
    %v153 = vpop.f32.mrf.mxu0
    %v154 = vadd.f32 %v50, %v153
    %v155 = vpop.f32.mrf.mxu0
    %156 = vmatprep.mubr.f32.mxu0 0.0
    %157 = vmatmul.mubr.f32.gmra.mxu0 %v59
    %v158 = vpop.f32.mrf.mxu0
    %v159 = vadd.f32 %v50, %v158
    %v160 = vpop.f32.mrf.mxu0
    %161 = vmatprep.mubr.f32.mxu0 0.0
    %162 = vmatmul.mubr.f32.gmra.mxu0 %v62
    %v163 = vpop.f32.mrf.mxu0
    %v164 = vadd.f32 %v50, %v163
    %v165 = vpop.f32.mrf.mxu0
    %166 = vmatprep.mubr.f32.mxu0 0.0
    %167 = vmatmul.mubr.f32.gmra.mxu0 %v65
    %v168 = vpop.f32.mrf.mxu0
    %v169 = vadd.f32 %v50, %v168
    %v170 = vpop.f32.mrf.mxu0
    %171 = vmatprep.mubr.f32.mxu0 0.0
    %172 = vmatmul.mubr.f32.gmra.mxu0 %v68
    %v173 = vpop.f32.mrf.mxu0
    %v174 = vadd.f32 %v50, %v173
    %v175 = vpop.f32.mrf.mxu0
    %176 = vmatprep.mubr.f32.mxu0 0.0
    %177 = vmatmul.mubr.f32.gmra.mxu0 %v71
    %v178 = vpop.f32.mrf.mxu0
    %v179 = vadd.f32 %v50, %v178
    %v180 = vpop.f32.mrf.mxu0
    %181 = vmatprep.mubr.f32.mxu0 0.0
    %182 = vmatmul.mubr.f32.gmra.mxu0 %v74
    %v183 = vpop.f32.mrf.mxu0
    %v184 = vadd.f32 %v50, %v183
    %v185 = vpop.f32.mrf.mxu0
    %186 = vmatprep.mubr.f32.mxu0 0.0
    %187 = vmatmul.mubr.f32.gmra.mxu0 %v77
    %v188 = vpop.f32.mrf.mxu0
    %v189 = vadd.f32 %v50, %v188
    %v190 = vpop.f32.mrf.mxu0
    %191 = vmatprep.mubr.f32.mxu0 0.0
    %192 = vmatmul.mubr.f32.gmra.mxu0 %v80
    %v193 = vpop.f32.mrf.mxu0
    %v194 = vadd.f32 %v50, %v193
    %v195 = vpop.f32.mrf.mxu0
    %196 = vdwg.mxu0
    %v197 = vld [vmem:[%s1 + $0x40] sm:$0xff]
    %v198 = vld [vmem:[%s1 + $0x48] sm:$0xff]
    %v199 = vld [vmem:[%s1 + $0x50] sm:$0xff]
    %v200 = vld [vmem:[%s1 + $0x58] sm:$0xff]
    %v201 = vld [vmem:[%s1 + $0x60] sm:$0xff]
    %v202 = vld [vmem:[%s1 + $0x68] sm:$0xff]
    %v203 = vld [vmem:[%s1 + $0x70] sm:$0xff]
    %v204 = vld [vmem:[%s1 + $0x78] sm:$0xff]
    %213 = vrot.lane.b32.xlu0 %v197, 96
    %v214 = vpop.permute.xlu0 %213
    %215 = vrot.lane.b32.xlu0 %v198, 96
    %v216 = vpop.permute.xlu0 %215
    %217 = vrot.lane.b32.xlu0 %v199, 96
    %v218 = vpop.permute.xlu0 %217
    %219 = vrot.lane.b32.xlu0 %v200, 96
    %v220 = vpop.permute.xlu0 %219
    %221 = vrot.lane.b32.xlu0 %v201, 96
    %v222 = vpop.permute.xlu0 %221
    %223 = vrot.lane.b32.xlu0 %v202, 96
    %v224 = vpop.permute.xlu0 %223
    %225 = vrot.lane.b32.xlu0 %v203, 96
    %v226 = vpop.permute.xlu0 %225
    %227 = vrot.lane.b32.xlu0 %v204, 96
    %v228 = vpop.permute.xlu0 %227
    %v237 = vmul.f32 %v149, %v214
    %v238 = vmul.f32 %v149, %v216
    %v239 = vmul.f32 %v149, %v218
    %v240 = vmul.f32 %v149, %v220
    %v241 = vmul.f32 %v154, %v222
    %v242 = vmul.f32 %v154, %v224
    %v243 = vmul.f32 %v154, %v226
    %v244 = vmul.f32 %v154, %v228
    %v245 = vld [vmem:[%s1 + $0x40] sm:$0xff]
    %v246 = vld [vmem:[%s1 + $0x48] sm:$0xff]
    %v247 = vld [vmem:[%s1 + $0x50] sm:$0xff]
    %v248 = vld [vmem:[%s1 + $0x58] sm:$0xff]
    %v249 = vld [vmem:[%s1 + $0x60] sm:$0xff]
    %v250 = vld [vmem:[%s1 + $0x68] sm:$0xff]
    %v251 = vld [vmem:[%s1 + $0x70] sm:$0xff]
    %v252 = vld [vmem:[%s1 + $0x78] sm:$0xff]
    %257 = vrot.lane.b32.xlu0 %v159, 96
    %v258 = vpop.permute.xlu0 %257
    %259 = vrot.lane.b32.xlu0 %v164, 96
    %v260 = vpop.permute.xlu0 %259
    %261 = vrot.lane.b32.xlu0 %v169, 96
    %v262 = vpop.permute.xlu0 %261
    %263 = vrot.lane.b32.xlu0 %v174, 96
    %v264 = vpop.permute.xlu0 %263
    %273 = vrot.lane.b32.xlu0 %v245, 64
    %v274 = vpop.permute.xlu0 %273
    %275 = vrot.lane.b32.xlu0 %v246, 64
    %v276 = vpop.permute.xlu0 %275
    %277 = vrot.lane.b32.xlu0 %v247, 64
    %v278 = vpop.permute.xlu0 %277
    %279 = vrot.lane.b32.xlu0 %v248, 64
    %v280 = vpop.permute.xlu0 %279
    %281 = vrot.lane.b32.xlu0 %v249, 64
    %v282 = vpop.permute.xlu0 %281
    %283 = vrot.lane.b32.xlu0 %v250, 64
    %v284 = vpop.permute.xlu0 %283
    %285 = vrot.lane.b32.xlu0 %v251, 64
    %v286 = vpop.permute.xlu0 %285
    %287 = vrot.lane.b32.xlu0 %v252, 64
    %v288 = vpop.permute.xlu0 %287
    %v298 = vsel %vm51, %v237, 0
    %v301 = vsel %vm51, %v238, 0
    %v304 = vsel %vm51, %v239, 0
    %v307 = vsel %vm51, %v240, 0
    %v310 = vsel %vm51, %v241, 0
    %v313 = vsel %vm51, %v242, 0
    %v316 = vsel %vm51, %v243, 0
    %v319 = vsel %vm51, %v244, 0
    %v321 = vsel %vm51, %v258, 0
    %v323 = vsel %vm51, %v260, 0
    %v325 = vsel %vm51, %v262, 0
    %v327 = vsel %vm51, %v264, 0
    %329 = vmatprep.subr.mxu0 0.0
    %330 = vmatpush1.xpose.msra.mxu0 0.0
    %331 = vmatprep.subr.mxu0 0.0
    %332 = vmatpush1.xpose.msra.mxu0 0.0
    %333 = vmatprep.subr.mxu0 0.0
    %334 = vmatpush1.xpose.msra.mxu0 0.0
    %335 = vmatprep.subr.mxu0 0.0
    %336 = vmatpush1.xpose.msra.mxu0 0.0
    %337 = vmatprep.subr.mxu0 0.0
    %338 = vmatpush1.xpose.msra.mxu0 0.0
    %339 = vmatprep.subr.mxu0 0.0
    %340 = vmatpush1.xpose.msra.mxu0 0.0
    %341 = vmatprep.subr.mxu0 0.0
    %342 = vmatpush1.xpose.msra.mxu0 0.0
    %343 = vmatprep.subr.mxu0 0.0
    %344 = vmatpush1.xpose.msra.mxu0 0.0
    %345 = vmatprep.subr.mxu0 0.0
    %346 = vmatpush1.xpose.msra.mxu0 0.0
    %347 = vmatprep.subr.mxu0 0.0
    %348 = vmatpush1.xpose.msra.mxu0 0.0
    %349 = vmatprep.subr.mxu0 0.0
    %350 = vmatpush1.xpose.msra.mxu0 0.0
    %351 = vmatprep.subr.mxu0 0.0
    %352 = vmatpush1.xpose.msra.mxu0 0.0
    %353 = vmatprep.subr.mxu0 0.0
    %354 = vmatpush1.xpose.msra.mxu0 %v327
    %355 = vmatprep.subr.mxu0 0.0
    %356 = vmatpush1.xpose.msra.mxu0 %v325
    %357 = vmatprep.subr.mxu0 0.0
    %358 = vmatpush1.xpose.msra.mxu0 %v323
    %359 = vmatprep.subr.mxu0 0.0
    %360 = vmatpush1.xpose.msra.mxu0 %v321
    %361 = vmatprep.subr.mxu0 0.0
    %362 = vmatpush2.xpose.msra.mxu0 0.0
    %363 = vmatprep.subr.mxu0 0.0
    %364 = vmatpush2.xpose.msra.mxu0 0.0
    %365 = vmatprep.subr.mxu0 0.0
    %366 = vmatpush2.xpose.msra.mxu0 0.0
    %367 = vmatprep.subr.mxu0 0.0
    %368 = vmatpush2.xpose.msra.mxu0 0.0
    %369 = vmatprep.subr.mxu0 0.0
    %370 = vmatpush2.xpose.msra.mxu0 0.0
    %371 = vmatprep.subr.mxu0 0.0
    %372 = vmatpush2.xpose.msra.mxu0 0.0
    %373 = vmatprep.subr.mxu0 0.0
    %374 = vmatpush2.xpose.msra.mxu0 0.0
    %375 = vmatprep.subr.mxu0 0.0
    %376 = vmatpush2.xpose.msra.mxu0 0.0
    %377 = vmatprep.subr.mxu0 0.0
    %378 = vmatpush2.xpose.msra.mxu0 0.0
    %379 = vmatprep.subr.mxu0 0.0
    %380 = vmatpush2.xpose.msra.mxu0 0.0
    %381 = vmatprep.subr.mxu0 0.0
    %382 = vmatpush2.xpose.msra.mxu0 0.0
    %383 = vmatprep.subr.mxu0 0.0
    %384 = vmatpush2.xpose.msra.mxu0 0.0
    %385 = vmatprep.subr.mxu0 0.0
    %386 = vmatpush2.xpose.msra.mxu0 0.0
    %387 = vmatprep.subr.mxu0 0.0
    %388 = vmatpush2.xpose.msra.mxu0 0.0
    %389 = vmatprep.subr.mxu0 0.0
    %390 = vmatpush2.xpose.msra.mxu0 0.0
    %391 = vmatprep.subr.mxu0 0.0
    %392 = vmatpush2.xpose.msra.mxu0 0.0
    %393 = vmatprep.mubr.f32.mxu0 0.0
    %394 = vmatmul.mubr.f32.gmra.mxu0 %v298
    %v395 = vpop.f32.mrf.mxu0
    %v396 = vadd.f32 %v274, %v395
    %v397 = vpop.f32.mrf.mxu0
    %398 = vmatprep.mubr.f32.mxu0 0.0
    %399 = vmatmul.mubr.f32.gmra.mxu0 %v301
    %v400 = vpop.f32.mrf.mxu0
    %v401 = vadd.f32 %v276, %v400
    %v402 = vpop.f32.mrf.mxu0
    %403 = vmatprep.mubr.f32.mxu0 0.0
    %404 = vmatmul.mubr.f32.gmra.mxu0 %v304
    %v405 = vpop.f32.mrf.mxu0
    %v406 = vadd.f32 %v278, %v405
    %v407 = vpop.f32.mrf.mxu0
    %408 = vmatprep.mubr.f32.mxu0 0.0
    %409 = vmatmul.mubr.f32.gmra.mxu0 %v307
    %v410 = vpop.f32.mrf.mxu0
    %v411 = vadd.f32 %v280, %v410
    %v412 = vpop.f32.mrf.mxu0
    %413 = vmatprep.mubr.f32.mxu0 0.0
    %414 = vmatmul.mubr.f32.gmra.mxu0 %v310
    %v415 = vpop.f32.mrf.mxu0
    %v416 = vadd.f32 %v282, %v415
    %v417 = vpop.f32.mrf.mxu0
    %418 = vmatprep.mubr.f32.mxu0 0.0
    %419 = vmatmul.mubr.f32.gmra.mxu0 %v313
    %v420 = vpop.f32.mrf.mxu0
    %v421 = vadd.f32 %v284, %v420
    %v422 = vpop.f32.mrf.mxu0
    %423 = vmatprep.mubr.f32.mxu0 0.0
    %424 = vmatmul.mubr.f32.gmra.mxu0 %v316
    %v425 = vpop.f32.mrf.mxu0
    %v426 = vadd.f32 %v286, %v425
    %v427 = vpop.f32.mrf.mxu0
    %428 = vmatprep.mubr.f32.mxu0 0.0
    %429 = vmatmul.mubr.f32.gmra.mxu0 %v319
    %v430 = vpop.f32.mrf.mxu0
    %v431 = vadd.f32 %v288, %v430
    %v432 = vpop.f32.mrf.mxu0
    %433 = vdwg.mxu0
    %v434 = vsel %vm51, %v396, -inf
    %435 = vmax.xlane.f32.xlu0 %v434
    %v436 = vpop.xlane.xlu0 %435
    %v437 = vsel %vm51, %v401, -inf
    %438 = vmax.xlane.f32.xlu0 %v437
    %v439 = vpop.xlane.xlu0 %438
    %v440 = vsel %vm51, %v406, -inf
    %441 = vmax.xlane.f32.xlu0 %v440
    %v442 = vpop.xlane.xlu0 %441
    %v443 = vsel %vm51, %v411, -inf
    %444 = vmax.xlane.f32.xlu0 %v443
    %v445 = vpop.xlane.xlu0 %444
    %v446 = vsel %vm51, %v416, -inf
    %447 = vmax.xlane.f32.xlu0 %v446
    %v448 = vpop.xlane.xlu0 %447
    %v449 = vsel %vm51, %v421, -inf
    %450 = vmax.xlane.f32.xlu0 %v449
    %v451 = vpop.xlane.xlu0 %450
    %v452 = vsel %vm51, %v426, -inf
    %453 = vmax.xlane.f32.xlu0 %v452
    %v454 = vpop.xlane.xlu0 %453
    %v455 = vsel %vm51, %v431, -inf
    %456 = vmax.xlane.f32.xlu0 %v455
    %v457 = vpop.xlane.xlu0 %456
    %v458 = vsub.f32 %v396, %v436
    %v459 = vsub.f32 %v401, %v439
    %v460 = vsub.f32 %v406, %v442
    %v461 = vsub.f32 %v411, %v445
    %v462 = vsub.f32 %v416, %v448
    %v463 = vsub.f32 %v421, %v451
    %v464 = vsub.f32 %v426, %v454
    %v465 = vsub.f32 %v431, %v457
    %v466 = vmul.f32 %v458, 1.442695
    %v467 = vpow.pop %v466
    %v468 = vmul.f32 %v459, 1.442695
    %v469 = vpow.pop %v468
    %v470 = vmul.f32 %v460, 1.442695
    %v471 = vpow.pop %v470
    %v472 = vmul.f32 %v461, 1.442695
    %v473 = vpow.pop %v472
    %v474 = vmul.f32 %v462, 1.442695
    %v475 = vpow.pop %v474
    %v476 = vmul.f32 %v463, 1.442695
    %v477 = vpow.pop %v476
    %v478 = vmul.f32 %v464, 1.442695
    %v479 = vpow.pop %v478
    %v480 = vmul.f32 %v465, 1.442695
    %v481 = vpow.pop %v480
    %v482 = vsel %vm51, %v467, 0.0
    %483 = vadd.xlane.f32.xlu0 %v482
    %v484 = vpop.xlane.xlu0 %483
    %v485 = vsel %vm51, %v469, 0.0
    %486 = vadd.xlane.f32.xlu0 %v485
    %v487 = vpop.xlane.xlu0 %486
    %v488 = vsel %vm51, %v471, 0.0
    %489 = vadd.xlane.f32.xlu0 %v488
    %v490 = vpop.xlane.xlu0 %489
    %v491 = vsel %vm51, %v473, 0.0
    %492 = vadd.xlane.f32.xlu0 %v491
    %v493 = vpop.xlane.xlu0 %492
    %v494 = vsel %vm51, %v475, 0.0
    %495 = vadd.xlane.f32.xlu0 %v494
    %v496 = vpop.xlane.xlu0 %495
    %v497 = vsel %vm51, %v477, 0.0
    %498 = vadd.xlane.f32.xlu0 %v497
    %v499 = vpop.xlane.xlu0 %498
    %v500 = vsel %vm51, %v479, 0.0
    %501 = vadd.xlane.f32.xlu0 %v500
    %v502 = vpop.xlane.xlu0 %501
    %v503 = vsel %vm51, %v481, 0.0
    %504 = vadd.xlane.f32.xlu0 %v503
    %v505 = vpop.xlane.xlu0 %504
    %v506 = vrcp.pop %v484
    %v507 = vmul.f32 %v467, %v506
    %v508 = vrcp.pop %v487
    %v509 = vmul.f32 %v469, %v508
    %v510 = vrcp.pop %v490
    %v511 = vmul.f32 %v471, %v510
    %v512 = vrcp.pop %v493
    %v513 = vmul.f32 %v473, %v512
    %v514 = vrcp.pop %v496
    %v515 = vmul.f32 %v475, %v514
    %v516 = vrcp.pop %v499
    %v517 = vmul.f32 %v477, %v516
    %v518 = vrcp.pop %v502
    %v519 = vmul.f32 %v479, %v518
    %v520 = vrcp.pop %v505
    %v521 = vmul.f32 %v481, %v520
    %526 = vrot.lane.b32.xlu0 %v179, 64
    %v527 = vpop.permute.xlu0 %526
    %528 = vrot.lane.b32.xlu0 %v184, 64
    %v529 = vpop.permute.xlu0 %528
    %530 = vrot.lane.b32.xlu0 %v189, 64
    %v531 = vpop.permute.xlu0 %530
    %532 = vrot.lane.b32.xlu0 %v194, 64
    %v533 = vpop.permute.xlu0 %532
    %v539 = vsel %vm51, %v507, 0
    %v542 = vsel %vm51, %v509, 0
    %v545 = vsel %vm51, %v511, 0
    %v548 = vsel %vm51, %v513, 0
    %v551 = vsel %vm51, %v515, 0
    %v554 = vsel %vm51, %v517, 0
    %v557 = vsel %vm51, %v519, 0
    %v560 = vsel %vm51, %v521, 0
    %562 = vmatprep.subr.mxu0 0.0
    %563 = vmatpush1.msra.mxu0 0.0
    %564 = vmatprep.subr.mxu0 0.0
    %565 = vmatpush1.msra.mxu0 0.0
    %566 = vmatprep.subr.mxu0 0.0
    %567 = vmatpush1.msra.mxu0 0.0
    %568 = vmatprep.subr.mxu0 0.0
    %569 = vmatpush1.msra.mxu0 0.0
    %570 = vmatprep.subr.mxu0 0.0
    %571 = vmatpush1.msra.mxu0 0.0
    %572 = vmatprep.subr.mxu0 0.0
    %573 = vmatpush1.msra.mxu0 0.0
    %574 = vmatprep.subr.mxu0 0.0
    %575 = vmatpush1.msra.mxu0 0.0
    %576 = vmatprep.subr.mxu0 0.0
    %577 = vmatpush1.msra.mxu0 0.0
    %578 = vmatprep.subr.mxu0 0.0
    %579 = vmatpush1.msra.mxu0 0.0
    %580 = vmatprep.subr.mxu0 0.0
    %581 = vmatpush1.msra.mxu0 0.0
    %582 = vmatprep.subr.mxu0 0.0
    %583 = vmatpush1.msra.mxu0 0.0
    %584 = vmatprep.subr.mxu0 0.0
    %585 = vmatpush1.msra.mxu0 0.0
    %586 = vmatprep.subr.mxu0 0.0
    %587 = vmatpush1.msra.mxu0 %v533
    %588 = vmatprep.subr.mxu0 0.0
    %589 = vmatpush1.msra.mxu0 %v531
    %590 = vmatprep.subr.mxu0 0.0
    %591 = vmatpush1.msra.mxu0 %v529
    %592 = vmatprep.subr.mxu0 0.0
    %593 = vmatpush1.msra.mxu0 %v527
    %594 = vmatprep.subr.mxu0 0.0
    %595 = vmatpush2.msra.mxu0 0.0
    %596 = vmatprep.subr.mxu0 0.0
    %597 = vmatpush2.msra.mxu0 0.0
    %598 = vmatprep.subr.mxu0 0.0
    %599 = vmatpush2.msra.mxu0 0.0
    %600 = vmatprep.subr.mxu0 0.0
    %601 = vmatpush2.msra.mxu0 0.0
    %602 = vmatprep.subr.mxu0 0.0
    %603 = vmatpush2.msra.mxu0 0.0
    %604 = vmatprep.subr.mxu0 0.0
    %605 = vmatpush2.msra.mxu0 0.0
    %606 = vmatprep.subr.mxu0 0.0
    %607 = vmatpush2.msra.mxu0 0.0
    %608 = vmatprep.subr.mxu0 0.0
    %609 = vmatpush2.msra.mxu0 0.0
    %610 = vmatprep.subr.mxu0 0.0
    %611 = vmatpush2.msra.mxu0 0.0
    %612 = vmatprep.subr.mxu0 0.0
    %613 = vmatpush2.msra.mxu0 0.0
    %614 = vmatprep.subr.mxu0 0.0
    %615 = vmatpush2.msra.mxu0 0.0
    %616 = vmatprep.subr.mxu0 0.0
    %617 = vmatpush2.msra.mxu0 0.0
    %618 = vmatprep.subr.mxu0 0.0
    %619 = vmatpush2.msra.mxu0 0.0
    %620 = vmatprep.subr.mxu0 0.0
    %621 = vmatpush2.msra.mxu0 0.0
    %622 = vmatprep.subr.mxu0 0.0
    %623 = vmatpush2.msra.mxu0 0.0
    %624 = vmatprep.subr.mxu0 0.0
    %625 = vmatpush2.msra.mxu0 0.0
    %626 = vmatprep.mubr.f32.mxu0 0.0
    %627 = vmatmul.mubr.f32.gmra.mxu0 %v539
    %v628 = vpop.f32.mrf.mxu0
    %v629 = vadd.f32 0.0, %v628
    %v630 = vpop.f32.mrf.mxu0
    %631 = vmatprep.mubr.f32.mxu0 0.0
    %632 = vmatmul.mubr.f32.gmra.mxu0 %v542
    %v633 = vpop.f32.mrf.mxu0
    %v634 = vadd.f32 0.0, %v633
    %v635 = vpop.f32.mrf.mxu0
    %636 = vmatprep.mubr.f32.mxu0 0.0
    %637 = vmatmul.mubr.f32.gmra.mxu0 %v545
    %v638 = vpop.f32.mrf.mxu0
    %v639 = vadd.f32 0.0, %v638
    %v640 = vpop.f32.mrf.mxu0
    %641 = vmatprep.mubr.f32.mxu0 0.0
    %642 = vmatmul.mubr.f32.gmra.mxu0 %v548
    %v643 = vpop.f32.mrf.mxu0
    %v644 = vadd.f32 0.0, %v643
    %v645 = vpop.f32.mrf.mxu0
    %646 = vmatprep.mubr.f32.mxu0 0.0
    %647 = vmatmul.mubr.f32.gmra.mxu0 %v551
    %v648 = vpop.f32.mrf.mxu0
    %v649 = vadd.f32 0.0, %v648
    %v650 = vpop.f32.mrf.mxu0
    %651 = vmatprep.mubr.f32.mxu0 0.0
    %652 = vmatmul.mubr.f32.gmra.mxu0 %v554
    %v653 = vpop.f32.mrf.mxu0
    %v654 = vadd.f32 0.0, %v653
    %v655 = vpop.f32.mrf.mxu0
    %656 = vmatprep.mubr.f32.mxu0 0.0
    %657 = vmatmul.mubr.f32.gmra.mxu0 %v557
    %v658 = vpop.f32.mrf.mxu0
    %v659 = vadd.f32 0.0, %v658
    %v660 = vpop.f32.mrf.mxu0
    %661 = vmatprep.mubr.f32.mxu0 0.0
    %662 = vmatmul.mubr.f32.gmra.mxu0 %v560
    %v663 = vpop.f32.mrf.mxu0
    %v664 = vadd.f32 0.0, %v663
    %v665 = vpop.f32.mrf.mxu0
    %666 = vdwg.mxu0
    %667 = vrot.lane.b32.xlu0 %v245, 96
    %v668 = vpop.permute.xlu0 %667
    %669 = vrot.lane.b32.xlu0 %v246, 96
    %v670 = vpop.permute.xlu0 %669
    %671 = vrot.lane.b32.xlu0 %v247, 96
    %v672 = vpop.permute.xlu0 %671
    %673 = vrot.lane.b32.xlu0 %v248, 96
    %v674 = vpop.permute.xlu0 %673
    %675 = vrot.lane.b32.xlu0 %v249, 96
    %v676 = vpop.permute.xlu0 %675
    %677 = vrot.lane.b32.xlu0 %v250, 96
    %v678 = vpop.permute.xlu0 %677
    %679 = vrot.lane.b32.xlu0 %v251, 96
    %v680 = vpop.permute.xlu0 %679
    %681 = vrot.lane.b32.xlu0 %v252, 96
    %v682 = vpop.permute.xlu0 %681
    %v691 = vmul.f32 %v629, %v668
    %v692 = vmul.f32 %v634, %v670
    %v693 = vmul.f32 %v639, %v672
    %v694 = vmul.f32 %v644, %v674
    %v695 = vmul.f32 %v649, %v676
    %v696 = vmul.f32 %v654, %v678
    %v697 = vmul.f32 %v659, %v680
    %v698 = vmul.f32 %v664, %v682
    %v699 = vadd.f32 %v691, %v692
    %v700 = vadd.f32 %v699, %v693
    %v701 = vadd.f32 %v700, %v694
    %v702 = vadd.f32 %v695, %v696
    %v703 = vadd.f32 %v702, %v697
    %v704 = vadd.f32 %v703, %v698
    %v705 = vld [vmem:[%s1 + $0x20] sm:$0xff]
    %v706 = vld [vmem:[%s1 + $0x28] sm:$0xff]
    %v707 = vld [vmem:[%s1 + $0x30] sm:$0xff]
    %v708 = vld [vmem:[%s1 + $0x38] sm:$0xff]
    %v709 = vld [vmem:[%s1 + $0x88] sm:$0x1]
    %v710 = vlaneseq
    %v711 = vshrl.u32 %v710, 7
    %v712 = vsub.s32 0, %v711
    %v713 = vrot.slane %v709, %v712
    %v715 = vsel %vm51, %v701, 0
    %v718 = vsel %vm51, %v704, 0
    %720 = vmatprep.subr.mxu0 0.0
    %721 = vmatpush1.msra.mxu0 0.0
    %722 = vmatprep.subr.mxu0 0.0
    %723 = vmatpush1.msra.mxu0 0.0
    %724 = vmatprep.subr.mxu0 0.0
    %725 = vmatpush1.msra.mxu0 0.0
    %726 = vmatprep.subr.mxu0 0.0
    %727 = vmatpush1.msra.mxu0 0.0
    %728 = vmatprep.subr.mxu0 0.0
    %729 = vmatpush1.msra.mxu0 0.0
    %730 = vmatprep.subr.mxu0 0.0
    %731 = vmatpush1.msra.mxu0 0.0
    %732 = vmatprep.subr.mxu0 0.0
    %733 = vmatpush1.msra.mxu0 0.0
    %734 = vmatprep.subr.mxu0 0.0
    %735 = vmatpush1.msra.mxu0 0.0
    %736 = vmatprep.subr.mxu0 0.0
    %737 = vmatpush1.msra.mxu0 0.0
    %738 = vmatprep.subr.mxu0 0.0
    %739 = vmatpush1.msra.mxu0 0.0
    %740 = vmatprep.subr.mxu0 0.0
    %741 = vmatpush1.msra.mxu0 0.0
    %742 = vmatprep.subr.mxu0 0.0
    %743 = vmatpush1.msra.mxu0 0.0
    %744 = vmatprep.subr.mxu0 0.0
    %745 = vmatpush1.msra.mxu0 %v708
    %746 = vmatprep.subr.mxu0 0.0
    %747 = vmatpush1.msra.mxu0 %v707
    %748 = vmatprep.subr.mxu0 0.0
    %749 = vmatpush1.msra.mxu0 %v706
    %750 = vmatprep.subr.mxu0 0.0
    %751 = vmatpush1.msra.mxu0 %v705
    %752 = vmatprep.subr.mxu0 0.0
    %753 = vmatpush2.msra.mxu0 0.0
    %754 = vmatprep.subr.mxu0 0.0
    %755 = vmatpush2.msra.mxu0 0.0
    %756 = vmatprep.subr.mxu0 0.0
    %757 = vmatpush2.msra.mxu0 0.0
    %758 = vmatprep.subr.mxu0 0.0
    %759 = vmatpush2.msra.mxu0 0.0
    %760 = vmatprep.subr.mxu0 0.0
    %761 = vmatpush2.msra.mxu0 0.0
    %762 = vmatprep.subr.mxu0 0.0
    %763 = vmatpush2.msra.mxu0 0.0
    %764 = vmatprep.subr.mxu0 0.0
    %765 = vmatpush2.msra.mxu0 0.0
    %766 = vmatprep.subr.mxu0 0.0
    %767 = vmatpush2.msra.mxu0 0.0
    %768 = vmatprep.subr.mxu0 0.0
    %769 = vmatpush2.msra.mxu0 0.0
    %770 = vmatprep.subr.mxu0 0.0
    %771 = vmatpush2.msra.mxu0 0.0
    %772 = vmatprep.subr.mxu0 0.0
    %773 = vmatpush2.msra.mxu0 0.0
    %774 = vmatprep.subr.mxu0 0.0
    %775 = vmatpush2.msra.mxu0 0.0
    %776 = vmatprep.subr.mxu0 0.0
    %777 = vmatpush2.msra.mxu0 0.0
    %778 = vmatprep.subr.mxu0 0.0
    %779 = vmatpush2.msra.mxu0 0.0
    %780 = vmatprep.subr.mxu0 0.0
    %781 = vmatpush2.msra.mxu0 0.0
    %782 = vmatprep.subr.mxu0 0.0
    %783 = vmatpush2.msra.mxu0 0.0
    %784 = vmatprep.mubr.f32.mxu0 0.0
    %785 = vmatmul.mubr.f32.gmra.mxu0 %v715
    %v786 = vpop.f32.mrf.mxu0
    %v787 = vadd.f32 %v713, %v786
    %v788 = vpop.f32.mrf.mxu0
    %789 = vmatprep.mubr.f32.mxu0 0.0
    %790 = vmatmul.mubr.f32.gmra.mxu0 %v718
    %v791 = vpop.f32.mrf.mxu0
    %v792 = vadd.f32 %v713, %v791
    %v793 = vpop.f32.mrf.mxu0
    %794 = vdwg.mxu0
    %v795 = vld [vmem:[%s0] sm:$0xff]
    %v796 = vld [vmem:[%s0 + $0x8] sm:$0xff]
    %v797 = vadd.f32 %v795, %v787
    %v798 = vadd.f32 %v796, %v792
    %v799 = vsel %vm51, %v797, 0.0
    %800 = vadd.xlane.f32.xlu0 %v799
    %v801 = vpop.xlane.xlu0 %800
    %v802 = vsel %vm51, %v798, 0.0
    %803 = vadd.xlane.f32.xlu0 %v802
    %v804 = vpop.xlane.xlu0 %803
    %v805 = vrcp.pop 32.0
    %v806 = vmul.f32 %v801, %v805
    %v807 = vmul.f32 %v804, %v805
    %v808 = vsub.f32 %v797, %v806
    %v809 = vsub.f32 %v798, %v807
    %v810 = vmul.f32 %v808, %v808
    %v811 = vmul.f32 %v809, %v809
    %v812 = vsel %vm51, %v810, 0.0
    %813 = vadd.xlane.f32.xlu0 %v812
    %v814 = vpop.xlane.xlu0 %813
    %v815 = vsel %vm51, %v811, 0.0
    %816 = vadd.xlane.f32.xlu0 %v815
    %v817 = vpop.xlane.xlu0 %816
    %v818 = vmul.f32 %v814, %v805
    %v819 = vmul.f32 %v817, %v805
    %v820 = vadd.f32 %v818, 1e-05
    %v821 = vadd.f32 %v819, 1e-05
    %v822 = vrsqrt.pop %v820
    %v823 = vrsqrt.pop %v821
    %v824 = vmul.f32 %v808, %v822
    %v825 = vmul.f32 %v809, %v823
    %830 = vrot.lane.b32.xlu0 %v705, 96
    %v831 = vpop.permute.xlu0 %830
    %832 = vrot.lane.b32.xlu0 %v706, 96
    %v833 = vpop.permute.xlu0 %832
    %834 = vrot.lane.b32.xlu0 %v707, 96
    %v835 = vpop.permute.xlu0 %834
    %836 = vrot.lane.b32.xlu0 %v708, 96
    %v837 = vpop.permute.xlu0 %836
    %843 = vrot.lane.b32.xlu0 %v713, 96
    %v844 = vpop.permute.xlu0 %843
    %v847 = vsel %vm51, %v824, 0
    %v850 = vsel %vm51, %v825, 0
    %852 = vmatprep.subr.mxu0 0.0
    %853 = vmatpush1.msra.mxu0 0.0
    %854 = vmatprep.subr.mxu0 0.0
    %855 = vmatpush1.msra.mxu0 0.0
    %856 = vmatprep.subr.mxu0 0.0
    %857 = vmatpush1.msra.mxu0 0.0
    %858 = vmatprep.subr.mxu0 0.0
    %859 = vmatpush1.msra.mxu0 0.0
    %860 = vmatprep.subr.mxu0 0.0
    %861 = vmatpush1.msra.mxu0 0.0
    %862 = vmatprep.subr.mxu0 0.0
    %863 = vmatpush1.msra.mxu0 0.0
    %864 = vmatprep.subr.mxu0 0.0
    %865 = vmatpush1.msra.mxu0 0.0
    %866 = vmatprep.subr.mxu0 0.0
    %867 = vmatpush1.msra.mxu0 0.0
    %868 = vmatprep.subr.mxu0 0.0
    %869 = vmatpush1.msra.mxu0 0.0
    %870 = vmatprep.subr.mxu0 0.0
    %871 = vmatpush1.msra.mxu0 0.0
    %872 = vmatprep.subr.mxu0 0.0
    %873 = vmatpush1.msra.mxu0 0.0
    %874 = vmatprep.subr.mxu0 0.0
    %875 = vmatpush1.msra.mxu0 0.0
    %876 = vmatprep.subr.mxu0 0.0
    %877 = vmatpush1.msra.mxu0 %v837
    %878 = vmatprep.subr.mxu0 0.0
    %879 = vmatpush1.msra.mxu0 %v835
    %880 = vmatprep.subr.mxu0 0.0
    %881 = vmatpush1.msra.mxu0 %v833
    %882 = vmatprep.subr.mxu0 0.0
    %883 = vmatpush1.msra.mxu0 %v831
    %884 = vmatprep.subr.mxu0 0.0
    %885 = vmatpush2.msra.mxu0 0.0
    %886 = vmatprep.subr.mxu0 0.0
    %887 = vmatpush2.msra.mxu0 0.0
    %888 = vmatprep.subr.mxu0 0.0
    %889 = vmatpush2.msra.mxu0 0.0
    %890 = vmatprep.subr.mxu0 0.0
    %891 = vmatpush2.msra.mxu0 0.0
    %892 = vmatprep.subr.mxu0 0.0
    %893 = vmatpush2.msra.mxu0 0.0
    %894 = vmatprep.subr.mxu0 0.0
    %895 = vmatpush2.msra.mxu0 0.0
    %896 = vmatprep.subr.mxu0 0.0
    %897 = vmatpush2.msra.mxu0 0.0
    %898 = vmatprep.subr.mxu0 0.0
    %899 = vmatpush2.msra.mxu0 0.0
    %900 = vmatprep.subr.mxu0 0.0
    %901 = vmatpush2.msra.mxu0 0.0
    %902 = vmatprep.subr.mxu0 0.0
    %903 = vmatpush2.msra.mxu0 0.0
    %904 = vmatprep.subr.mxu0 0.0
    %905 = vmatpush2.msra.mxu0 0.0
    %906 = vmatprep.subr.mxu0 0.0
    %907 = vmatpush2.msra.mxu0 0.0
    %908 = vmatprep.subr.mxu0 0.0
    %909 = vmatpush2.msra.mxu0 0.0
    %910 = vmatprep.subr.mxu0 0.0
    %911 = vmatpush2.msra.mxu0 0.0
    %912 = vmatprep.subr.mxu0 0.0
    %913 = vmatpush2.msra.mxu0 0.0
    %914 = vmatprep.subr.mxu0 0.0
    %915 = vmatpush2.msra.mxu0 0.0
    %916 = vmatprep.mubr.f32.mxu0 0.0
    %917 = vmatmul.mubr.f32.gmra.mxu0 %v847
    %v918 = vpop.f32.mrf.mxu0
    %v919 = vadd.f32 %v844, %v918
    %v920 = vpop.f32.mrf.mxu0
    %921 = vmatprep.mubr.f32.mxu0 0.0
    %922 = vmatmul.mubr.f32.gmra.mxu0 %v850
    %v923 = vpop.f32.mrf.mxu0
    %v924 = vadd.f32 %v844, %v923
    %v925 = vpop.f32.mrf.mxu0
    %926 = vdwg.mxu0
    %v927 = vmax.f32 %v919, 0.0
    %v928 = vmax.f32 %v924, 0.0
    %v929 = vld [vmem:[%s1 + $0x90] sm:$0x1]
    %v930 = vlaneseq
    %v931 = vshrl.u32 %v930, 7
    %v932 = vsub.s32 0, %v931
    %v933 = vrot.slane %v929, %v932
    %vm934 = vcmask 523264
    %v936 = vsel %vm934, %v927, 0
    %v939 = vsel %vm934, %v928, 0
    %941 = vmatprep.subr.mxu0 0.0
    %942 = vmatpush1.msra.mxu0 0.0
    %943 = vmatprep.subr.mxu0 0.0
    %944 = vmatpush1.msra.mxu0 0.0
    %945 = vmatprep.subr.mxu0 0.0
    %946 = vmatpush1.msra.mxu0 0.0
    %947 = vmatprep.subr.mxu0 0.0
    %948 = vmatpush1.msra.mxu0 0.0
    %949 = vmatprep.subr.mxu0 0.0
    %950 = vmatpush1.msra.mxu0 0.0
    %951 = vmatprep.subr.mxu0 0.0
    %952 = vmatpush1.msra.mxu0 0.0
    %953 = vmatprep.subr.mxu0 0.0
    %954 = vmatpush1.msra.mxu0 0.0
    %955 = vmatprep.subr.mxu0 0.0
    %956 = vmatpush1.msra.mxu0 0.0
    %957 = vmatprep.subr.mxu0 0.0
    %958 = vmatpush1.msra.mxu0 %v252
    %959 = vmatprep.subr.mxu0 0.0
    %960 = vmatpush1.msra.mxu0 %v251
    %961 = vmatprep.subr.mxu0 0.0
    %962 = vmatpush1.msra.mxu0 %v250
    %963 = vmatprep.subr.mxu0 0.0
    %964 = vmatpush1.msra.mxu0 %v249
    %965 = vmatprep.subr.mxu0 0.0
    %966 = vmatpush1.msra.mxu0 %v248
    %967 = vmatprep.subr.mxu0 0.0
    %968 = vmatpush1.msra.mxu0 %v247
    %969 = vmatprep.subr.mxu0 0.0
    %970 = vmatpush1.msra.mxu0 %v246
    %971 = vmatprep.subr.mxu0 0.0
    %972 = vmatpush1.msra.mxu0 %v245
    %973 = vmatprep.subr.mxu0 0.0
    %974 = vmatpush2.msra.mxu0 0.0
    %975 = vmatprep.subr.mxu0 0.0
    %976 = vmatpush2.msra.mxu0 0.0
    %977 = vmatprep.subr.mxu0 0.0
    %978 = vmatpush2.msra.mxu0 0.0
    %979 = vmatprep.subr.mxu0 0.0
    %980 = vmatpush2.msra.mxu0 0.0
    %981 = vmatprep.subr.mxu0 0.0
    %982 = vmatpush2.msra.mxu0 0.0
    %983 = vmatprep.subr.mxu0 0.0
    %984 = vmatpush2.msra.mxu0 0.0
    %985 = vmatprep.subr.mxu0 0.0
    %986 = vmatpush2.msra.mxu0 0.0
    %987 = vmatprep.subr.mxu0 0.0
    %988 = vmatpush2.msra.mxu0 0.0
    %989 = vmatprep.subr.mxu0 0.0
    %990 = vmatpush2.msra.mxu0 0.0
    %991 = vmatprep.subr.mxu0 0.0
    %992 = vmatpush2.msra.mxu0 0.0
    %993 = vmatprep.subr.mxu0 0.0
    %994 = vmatpush2.msra.mxu0 0.0
    %995 = vmatprep.subr.mxu0 0.0
    %996 = vmatpush2.msra.mxu0 0.0
    %997 = vmatprep.subr.mxu0 0.0
    %998 = vmatpush2.msra.mxu0 0.0
    %999 = vmatprep.subr.mxu0 0.0
    %1000 = vmatpush2.msra.mxu0 0.0
    %1001 = vmatprep.subr.mxu0 0.0
    %1002 = vmatpush2.msra.mxu0 0.0
    %1003 = vmatprep.subr.mxu0 0.0
    %1004 = vmatpush2.msra.mxu0 0.0
    %1005 = vmatprep.mubr.f32.mxu0 0.0
    %1006 = vmatmul.mubr.f32.gmra.mxu0 %v936
    %v1007 = vpop.f32.mrf.mxu0
    %v1008 = vadd.f32 %v933, %v1007
    %v1009 = vpop.f32.mrf.mxu0
    %1010 = vmatprep.mubr.f32.mxu0 0.0
    %1011 = vmatmul.mubr.f32.gmra.mxu0 %v939
    %v1012 = vpop.f32.mrf.mxu0
    %v1013 = vadd.f32 %v933, %v1012
    %v1014 = vpop.f32.mrf.mxu0
    %1015 = vdwg.mxu0
    %v1016 = vadd.f32 %v824, %v1008
    %v1017 = vadd.f32 %v825, %v1013
    %1018 = vst.msk [vmem:[#allocation2] sm:$0xff] %vm51, %v1016
    %1019 = vst.msk [vmem:[#allocation2 + $0x8] sm:$0xff] %vm51, %v1017
    // Predicated region
    $region10: #{tpu_custom_call.1} parent=1 // pred_check
      _
    $region11: #{tpu_custom_call.1} parent=1 // pred_check_branch
      %1021 = sbr.rel (0) target = $region13
    $region12: #{tpu_custom_call.1} parent=1 // pred_region
      %s1023 = ssub.s32 256, 256
      %1024 = vsyncadd [#allocation3], %s1023
      %s1025 = sshll.u32 [#allocation2], 4
      %s1026 = int_to_ptr.vmem [resolvable:$true] %s1025
      %1031 = dma.vmem_to_hbm [thread:$0]  %s1026, 256, %s2, [#allocation3], 128, 128, 8
    $region13: #{tpu_custom_call.1} parent=1 // pred_fallthru
      _
    // Predicated region
    $region14: #{tpu_custom_call.1} parent=1 // pred_check
      _
    $region15: #{tpu_custom_call.1} parent=1 // pred_check_branch
      %1033 = sbr.rel (0) target = $region17
    $region16: #{tpu_custom_call.1} parent=1 // pred_region
      %1034 = dma.done [#allocation3], 256
    $region17: #{tpu_custom_call.1} parent=1 // pred_fallthru
      _
    %1035 = vsyncpa [#allocation3], 1

</llo_original>
